<compile_context>
chip_gen: v5e
topology: v5e:2x2
jax: 0.10.0
libtpu: 0.0.40
codegen_flags: <defaults>
</compile_context>

<pallas_src>
import jax
import jax.numpy as jnp
from jax.experimental import pallas as pl
from jax.experimental.pallas import tpu as pltpu


def _round_up(x: int, m: int) -> int:
    return ((x + m - 1) // m) * m


def _mlp_kernel(x_ref, wg_ref, wu_ref, bg_ref, bu_ref, wp_ref, bp_ref, o_ref):
    # x_ref:  (TM, Hp)   compute dtype (bf16 or f32)
    # wg_ref: (Hp, Ip)   gate half of c_fc, transposed to (in, out), compute dtype
    # wu_ref: (Hp, Ip)   up   half of c_fc, transposed to (in, out), compute dtype
    # bg_ref: (1, Ip)    f32
    # bu_ref: (1, Ip)    f32
    # wp_ref: (Ip, Hp)   c_proj, transposed to (in, out), compute dtype
    # bp_ref: (1, Hp)    f32
    # o_ref:  (TM, Hp)   output dtype (= original x dtype)
    x = x_ref[...]

    # Two clean MXU matmuls produce gate / up directly -- no lane-crossing slice
    # of a fused (., 2I) result.  f32 accumulation, bias add in f32.
    g = jnp.dot(x, wg_ref[...], preferred_element_type=jnp.float32) + bg_ref[...]
    u = jnp.dot(x, wu_ref[...], preferred_element_type=jnp.float32) + bu_ref[...]

    # swiglu: SiLU(g) * u, kept in f32 (VPU mul/add, EUP sigmoid).
    a = (g * jax.nn.sigmoid(g)) * u

    # c_proj: a @ W_proj^T + b_proj (MXU, f32 accumulate).
    y = jnp.dot(a.astype(wp_ref.dtype), wp_ref[...],
                preferred_element_type=jnp.float32) + bp_ref[...]

    # residual dropout with p = 0 -> Identity.
    o_ref[...] = y.astype(o_ref.dtype)


def prepare_mlp_params(w_fc, b_fc, w_proj, b_proj, *, compute_dtype=jnp.bfloat16):
    """One-time weight preparation (call OUTSIDE the per-step loop/jit so the
    transpose / split / pad / cast is not re-materialized in HBM every call).

    Torch Linear layout in:  w_fc (2I, H), b_fc (2I,), w_proj (H, I), b_proj (H,).
    Out: (in, out)-layout, GLU-split, lane-padded weights in `compute_dtype`
    plus f32 biases, along with padded sizes.
    """
    two_I, H = w_fc.shape
    assert two_I % 2 == 0
    I = two_I // 2
    assert w_proj.shape == (H, I)

    Hp = _round_up(H, 128)   # lane-dense input / output tiles (unmasked stores)
    Ip = _round_up(I, 128)   # lane-dense g / u / a intermediates

    def pad2(a, rows, cols):
        return jnp.pad(a, ((0, rows - a.shape[0]), (0, cols - a.shape[1])))

    # torch Linear computes x @ W^T; pre-transpose so the kernel does plain x @ W.
    w_g = pad2(w_fc[:I, :].T, Hp, Ip).astype(compute_dtype)       # (Hp, Ip)
    w_u = pad2(w_fc[I:, :].T, Hp, Ip).astype(compute_dtype)       # (Hp, Ip)
    w_p = pad2(w_proj.T, Ip, Hp).astype(compute_dtype)            # (Ip, Hp)
    b_g = jnp.pad(b_fc[:I], (0, Ip - I)).reshape(1, Ip).astype(jnp.float32)
    b_u = jnp.pad(b_fc[I:], (0, Ip - I)).reshape(1, Ip).astype(jnp.float32)
    b_p = jnp.pad(b_proj, (0, Hp - H)).reshape(1, Hp).astype(jnp.float32)

    return dict(w_g=w_g, w_u=w_u, b_g=b_g, b_u=b_u, w_p=w_p, b_p=b_p,
                H=H, I=I, Hp=Hp, Ip=Ip, compute_dtype=compute_dtype)


def mlp_forward(x, params, *, tm=None):
    """x: [batch, seq, hidden]. `params` from prepare_mlp_params."""
    B, S, H = x.shape
    assert H == params["H"]
    Hp, Ip = params["Hp"], params["Ip"]
    compute_dtype = params["compute_dtype"]
    out_dtype = x.dtype
    M = B * S

    if tm is None:
        # >= 2 row tiles when possible, so the "parallel" grid axis can be split
        # across both v7x TensorCores; rows kept a multiple of 8 (sublane).
        if M >= 16:
            tm = min(256, max(8, (M // 2) // 8 * 8))
        else:
            tm = M
    grid = (pl.cdiv(M, tm),)

    x2d = x.reshape(M, H)
    if Hp != H:
        x2d = jnp.pad(x2d, ((0, 0), (0, Hp - H)))   # zero-pad: exact math
    x2d = x2d.astype(compute_dtype)

    w_itm = jnp.dtype(compute_dtype).itemsize
    o_itm = jnp.dtype(out_dtype).itemsize
    # VMEM budget: single-buffered resident weights + double-buffered x/out tiles.
    weight_vmem = 3 * Hp * Ip * w_itm + (2 * Ip + Hp) * 4
    io_vmem = 2 * tm * Hp * (w_itm + o_itm)
    vmem_limit = int(min(100 * 1024 * 1024,
                         max(16 * 1024 * 1024, 4 * (weight_vmem + io_vmem))))

    cost = pl.CostEstimate(
        flops=6 * M * Hp * Ip,                        # g, u and proj matmuls
        transcendentals=M * Ip,                       # sigmoid in SiLU
        bytes_accessed=(M * Hp * (w_itm + o_itm)      # x in + y out
                        + 3 * Hp * Ip * w_itm         # weights
                        + (2 * Ip + Hp) * 4))         # biases

    resident = dict(pipeline_mode=pl.Buffered(1))     # constant blocks: no double-buffer

    out2d = pl.pallas_call(
        _mlp_kernel,
        out_shape=jax.ShapeDtypeStruct((M, Hp), out_dtype),
        grid_spec=pltpu.PrefetchScalarGridSpec(
            num_scalar_prefetch=0,
            grid=grid,
            in_specs=[
                pl.BlockSpec((tm, Hp), lambda i: (i, 0)),               # x tile
                pl.BlockSpec((Hp, Ip), lambda i: (0, 0), **resident),   # W_g
                pl.BlockSpec((Hp, Ip), lambda i: (0, 0), **resident),   # W_u
                pl.BlockSpec((1, Ip), lambda i: (0, 0), **resident),    # b_g
                pl.BlockSpec((1, Ip), lambda i: (0, 0), **resident),    # b_u
                pl.BlockSpec((Ip, Hp), lambda i: (0, 0), **resident),   # W_proj
                pl.BlockSpec((1, Hp), lambda i: (0, 0), **resident),    # b_proj
            ],
            out_specs=pl.BlockSpec((tm, Hp), lambda i: (i, 0)),
        ),
        compiler_params=pltpu.CompilerParams(
            dimension_semantics=("parallel",),
            vmem_limit_bytes=vmem_limit),
        cost_estimate=cost,
    )(x2d, params["w_g"], params["w_u"], params["b_g"], params["b_u"],
      params["w_p"], params["b_p"])

    return out2d[:, :H].reshape(B, S, H)


def mlp_reference(x, w_fc, b_fc, w_proj, b_proj):
    """Pure-JAX reference matching the PyTorch forward."""
    h = jnp.einsum("bsh,oh->bso", x, w_fc) + b_fc
    I = w_proj.shape[1]
    g, u = h[..., :I], h[..., I:]
    a = jax.nn.silu(g) * u
    return jnp.einsum("bsi,hi->bsh", a, w_proj) + b_proj


if __name__ == "__main__":
    # Deterministic synthetic parameters / inputs.
    batch, seq, hidden, inter = 2, 8, 32, 64
    key = jax.random.PRNGKey(0)
    k_x, k_wfc, k_bfc, k_wp, k_bp = jax.random.split(key, 5)

    x = jax.random.normal(k_x, (batch, seq, hidden), dtype=jnp.float32)
    # torch.nn.Linear weight layout: (out_features, in_features)
    w_fc = jax.random.normal(k_wfc, (2 * inter, hidden), dtype=jnp.float32) * 0.02
    b_fc = jax.random.normal(k_bfc, (2 * inter,), dtype=jnp.float32) * 0.02
    w_proj = jax.random.normal(k_wp, (hidden, inter), dtype=jnp.float32) * 0.02
    b_proj = jax.random.normal(k_bp, (hidden,), dtype=jnp.float32) * 0.02

    ref = mlp_reference(x, w_fc, b_fc, w_proj, b_proj)

    # f32 MXU path: tight check against the pure-JAX reference.
    params_f32 = prepare_mlp_params(w_fc, b_fc, w_proj, b_proj,
                                    compute_dtype=jnp.float32)
    out_f32 = jax.block_until_ready(mlp_forward(x, params_f32))
    assert out_f32.shape == (batch, seq, hidden)
    assert jnp.allclose(out_f32, ref, atol=1e-5, rtol=1e-5), "f32 mismatch vs reference"

    # bf16 MXU path (production config): f32 accumulate, looser tolerance.
    params_bf16 = prepare_mlp_params(w_fc, b_fc, w_proj, b_proj,
                                     compute_dtype=jnp.bfloat16)
    out_bf16 = jax.block_until_ready(mlp_forward(x, params_bf16))
    assert out_bf16.shape == (batch, seq, hidden)
    assert jnp.allclose(out_bf16, ref, atol=2e-2, rtol=5e-2), "bf16 mismatch vs reference"

    print("KERNEL_OK")
</pallas_src>

<mosaic_0001>
module attributes {stable_mosaic.version = 11 : i64} {
  func.func @_mlp_kernel(%arg0: i32, %arg1: memref<8x128xf32, #tpu.memory_space<vmem>>, %arg2: memref<128x128xf32, #tpu.memory_space<vmem>>, %arg3: memref<128x128xf32, #tpu.memory_space<vmem>>, %arg4: memref<1x128xf32, #tpu.memory_space<vmem>>, %arg5: memref<1x128xf32, #tpu.memory_space<vmem>>, %arg6: memref<128x128xf32, #tpu.memory_space<vmem>>, %arg7: memref<1x128xf32, #tpu.memory_space<vmem>>, %arg8: memref<8x128xf32, #tpu.memory_space<vmem>>) attributes {dimension_semantics = [#tpu.dimension_semantics<parallel>], iteration_bounds = array<i64: 2>, scalar_prefetch = 0 : i64, scratch_operands = 0 : i64, tpu.core_type = #tpu.core_type<tc>, window_params = [{transform_indices = @transform_0, window_bounds = array<i64: 8, 128>}, {pipeline_mode = #tpu.pipeline_mode<synchronous>, transform_indices = @transform_1, window_bounds = array<i64: 128, 128>}, {pipeline_mode = #tpu.pipeline_mode<synchronous>, transform_indices = @transform_2, window_bounds = array<i64: 128, 128>}, {pipeline_mode = #tpu.pipeline_mode<synchronous>, transform_indices = @transform_3, window_bounds = array<i64: 1, 128>}, {pipeline_mode = #tpu.pipeline_mode<synchronous>, transform_indices = @transform_4, window_bounds = array<i64: 1, 128>}, {pipeline_mode = #tpu.pipeline_mode<synchronous>, transform_indices = @transform_5, window_bounds = array<i64: 128, 128>}, {pipeline_mode = #tpu.pipeline_mode<synchronous>, transform_indices = @transform_6, window_bounds = array<i64: 1, 128>}, {transform_indices = @transform_7, window_bounds = array<i64: 8, 128>}]} {
    %c0 = arith.constant 0 : index
    %c0_0 = arith.constant 0 : index
    %0 = vector.load %arg1[%c0, %c0_0] : memref<8x128xf32, #tpu.memory_space<vmem>>, vector<8x128xf32>
    %c0_1 = arith.constant 0 : index
    %c0_2 = arith.constant 0 : index
    %1 = vector.load %arg2[%c0_1, %c0_2] : memref<128x128xf32, #tpu.memory_space<vmem>>, vector<128x128xf32>
    %cst = arith.constant dense<0.000000e+00> : vector<8x128xf32>
    %2 = tpu.matmul %0, %1, %cst {dimension_numbers = #tpu.dot_dimension_numbers<[1], [0], [0], [1], [0, 0, 1, 1], [], []>} : vector<8x128xf32>, vector<128x128xf32>, vector<8x128xf32> -> vector<8x128xf32>
    %c0_3 = arith.constant 0 : index
    %c0_4 = arith.constant 0 : index
    %3 = vector.load %arg4[%c0_3, %c0_4] : memref<1x128xf32, #tpu.memory_space<vmem>>, vector<1x128xf32>
    %4 = vector.broadcast %3 : vector<1x128xf32> to vector<8x128xf32>
    %5 = arith.addf %2, %4 : vector<8x128xf32>
    %c0_5 = arith.constant 0 : index
    %c0_6 = arith.constant 0 : index
    %6 = vector.load %arg3[%c0_5, %c0_6] : memref<128x128xf32, #tpu.memory_space<vmem>>, vector<128x128xf32>
    %cst_7 = arith.constant dense<0.000000e+00> : vector<8x128xf32>
    %7 = tpu.matmul %0, %6, %cst_7 {dimension_numbers = #tpu.dot_dimension_numbers<[1], [0], [0], [1], [0, 0, 1, 1], [], []>} : vector<8x128xf32>, vector<128x128xf32>, vector<8x128xf32> -> vector<8x128xf32>
    %c0_8 = arith.constant 0 : index
    %c0_9 = arith.constant 0 : index
    %8 = vector.load %arg5[%c0_8, %c0_9] : memref<1x128xf32, #tpu.memory_space<vmem>>, vector<1x128xf32>
    %9 = vector.broadcast %8 : vector<1x128xf32> to vector<8x128xf32>
    %10 = arith.addf %7, %9 : vector<8x128xf32>
    %11 = arith.negf %5 : vector<8x128xf32>
    %12 = math.exp %11 : vector<8x128xf32>
    %cst_10 = arith.constant 1.000000e+00 : f32
    %13 = vector.broadcast %cst_10 : f32 to vector<8x128xf32>
    %14 = arith.addf %13, %12 : vector<8x128xf32>
    %15 = arith.divf %13, %14 : vector<8x128xf32>
    %16 = arith.mulf %5, %15 : vector<8x128xf32>
    %17 = arith.mulf %16, %10 : vector<8x128xf32>
    %c0_11 = arith.constant 0 : index
    %c0_12 = arith.constant 0 : index
    %18 = vector.load %arg6[%c0_11, %c0_12] : memref<128x128xf32, #tpu.memory_space<vmem>>, vector<128x128xf32>
    %cst_13 = arith.constant dense<0.000000e+00> : vector<8x128xf32>
    %19 = tpu.matmul %17, %18, %cst_13 {dimension_numbers = #tpu.dot_dimension_numbers<[1], [0], [0], [1], [0, 0, 1, 1], [], []>} : vector<8x128xf32>, vector<128x128xf32>, vector<8x128xf32> -> vector<8x128xf32>
    %c0_14 = arith.constant 0 : index
    %c0_15 = arith.constant 0 : index
    %20 = vector.load %arg7[%c0_14, %c0_15] : memref<1x128xf32, #tpu.memory_space<vmem>>, vector<1x128xf32>
    %21 = vector.broadcast %20 : vector<1x128xf32> to vector<8x128xf32>
    %22 = arith.addf %19, %21 : vector<8x128xf32>
    %c0_16 = arith.constant 0 : index
    %c0_17 = arith.constant 0 : index
    %23 = vector.load %arg8[%c0_16, %c0_17] : memref<8x128xf32, #tpu.memory_space<vmem>>, vector<8x128xf32>
    tpu.vector_store %arg8[%c0_16, %c0_17], %22 {strides = array<i32>} : memref<8x128xf32, #tpu.memory_space<vmem>>, vector<8x128xf32>,
    return
  }
  func.func @transform_0(%arg0: i32) -> (i32, i32) {
    %c0_i32 = arith.constant 0 : i32
    %c0_i32_0 = arith.constant 0 : i32
    return %arg0, %c0_i32 : i32, i32
  }
  func.func @transform_1(%arg0: i32) -> (i32, i32) {
    %c0_i32 = arith.constant 0 : i32
    %c0_i32_0 = arith.constant 0 : i32
    %c0_i32_1 = arith.constant 0 : i32
    return %c0_i32, %c0_i32_0 : i32, i32
  }
  func.func @transform_2(%arg0: i32) -> (i32, i32) {
    %c0_i32 = arith.constant 0 : i32
    %c0_i32_0 = arith.constant 0 : i32
    %c0_i32_1 = arith.constant 0 : i32
    return %c0_i32, %c0_i32_0 : i32, i32
  }
  func.func @transform_3(%arg0: i32) -> (i32, i32) {
    %c0_i32 = arith.constant 0 : i32
    %c0_i32_0 = arith.constant 0 : i32
    %c0_i32_1 = arith.constant 0 : i32
    return %c0_i32, %c0_i32_0 : i32, i32
  }
  func.func @transform_4(%arg0: i32) -> (i32, i32) {
    %c0_i32 = arith.constant 0 : i32
    %c0_i32_0 = arith.constant 0 : i32
    %c0_i32_1 = arith.constant 0 : i32
    return %c0_i32, %c0_i32_0 : i32, i32
  }
  func.func @transform_5(%arg0: i32) -> (i32, i32) {
    %c0_i32 = arith.constant 0 : i32
    %c0_i32_0 = arith.constant 0 : i32
    %c0_i32_1 = arith.constant 0 : i32
    return %c0_i32, %c0_i32_0 : i32, i32
  }
  func.func @transform_6(%arg0: i32) -> (i32, i32) {
    %c0_i32 = arith.constant 0 : i32
    %c0_i32_0 = arith.constant 0 : i32
    %c0_i32_1 = arith.constant 0 : i32
    return %c0_i32, %c0_i32_0 : i32, i32
  }
  func.func @transform_7(%arg0: i32) -> (i32, i32) {
    %c0_i32 = arith.constant 0 : i32
    %c0_i32_0 = arith.constant 0 : i32
    return %arg0, %c0_i32 : i32, i32
  }
}

</mosaic_0001>

<llo_original>
// kernel: tpu_custom_call.1
$region0: #{tpu_custom_call.1}
  #allocation0 [shape = 'u32[]', space=smem, size = 0x4, offset = 0x4, fixed_abs, tag = 'smem constant byte address 0x4 - core index']
  #allocation1 [shape = 'u32[72,128]{1,0:T(1,128)}', space=vmem, size = 0x9000, scoped, tag = 'internal scratch']
  %s0 = inlined_call_operand.hbm [shape: f32[16,128], index: 0, kind: input, shape index: {}]
  %s1 = inlined_call_operand.hbm [shape: f32[128,128], index: 1, kind: input, shape index: {}]
  %s2 = inlined_call_operand.hbm [shape: f32[128,128], index: 2, kind: input, shape index: {}]
  %s3 = inlined_call_operand.vmem [shape: f32[1,128], index: 3, kind: input, shape index: {}]
  %s4 = inlined_call_operand.vmem [shape: f32[1,128], index: 4, kind: input, shape index: {}]
  %s5 = inlined_call_operand.hbm [shape: f32[128,128], index: 5, kind: input, shape index: {}]
  %s6 = inlined_call_operand.vmem [shape: f32[1,128], index: 6, kind: input, shape index: {}]
  %s7 = inlined_call_operand.hbm [shape: f32[16,128], index: 7, kind: output, shape index: {}]
  %s8 = sld [smem:[#allocation0]]
  $region77: #{tpu_custom_call.1} parent=0
    _
  %s10 = ssub.s32 1, %s8
  %s11 = scalar_select 0, %s10, %s8
  $region1: #{tpu_custom_call.1} parent=0
    #allocation2 [shape = 'u8[8192]{0}', space=vmem, size = 0x2000, scoped, tag = 'input window, operand 0']
    #allocation3 [shape = 's32[2]{0}', space=sflag, size = 0x8, scoped, tag = 'scoped memory for tpu_custom_call.1']
    #allocation4 [shape = 's32[2]{0}', space=sflag, size = 0x8, scoped, tag = 'scoped memory for tpu_custom_call.1']
    #allocation5 [shape = 'u8[65536]{0}', space=vmem, size = 0x10000, scoped, tag = 'input window, operand 1, single buffered']
    #allocation6 [shape = 's32[1]{0}', space=sflag, size = 0x4, scoped, tag = 'scoped memory for tpu_custom_call.1']
    #allocation7 [shape = 'u8[65536]{0}', space=vmem, size = 0x10000, scoped, tag = 'input window, operand 2, single buffered']
    #allocation8 [shape = 'u8[65536]{0}', space=vmem, size = 0x10000, scoped, tag = 'input window, operand 5, single buffered']
    #allocation9 [shape = 's32[1]{0}', space=sflag, size = 0x4, scoped, tag = 'scoped memory for tpu_custom_call.1']
    #allocation10 [shape = 'u8[8192]{0}', space=vmem, size = 0x2000, scoped, tag = 'output window, operand 0']
    %12 = vsyncpa [#allocation3], 0
    %s13 = scalar_lea.sflag [#allocation3], 1
    %14 = vsyncpa %s13, 0
    %15 = vsyncpa [#allocation6], 0
    %16 = vsyncpa [#allocation9], 0
    %17 = vsyncpa [#allocation4], 0
    %s18 = scalar_lea.sflag [#allocation4], 1
    %19 = vsyncpa %s18, 0
    loop: start=0, step=1, limit=4
    $region2: #{tpu_custom_call.1} parent=1 // loop_pre_header
      _
    $region3: #{tpu_custom_call.1} parent=1 // loop_header
      %s21 = sphi 0, %s25
      %p22 = scmp.ge.s32.totalorder %s21, 4
      %s31 = sphi 0, %s33
      %s34 = sphi 0, %s31
      %s35 = sphi 0, %s34
      %s51 = sphi 0, %s35
      %s55 = sphi 0, %s55
      %s57 = sphi 0, %s55
      %s58 = sphi 0, %s57
      %s72 = sphi 0, %s58
      %s76 = sphi 0, %s76
      %s78 = sphi 0, %s76
      %s79 = sphi 0, %s78
      %s93 = sphi 0, %s79
      %s97 = sphi 0, %s97
      %s99 = sphi 0, %s97
      %s100 = sphi 0, %s99
      %s114 = sphi 0, %s100
      %s118 = sphi 0, %s118
      %s120 = sphi 0, %s118
      %s121 = sphi 0, %s120
      %s135 = sphi 0, %s121
      %s139 = sphi 0, %s139
      %s141 = sphi 0, %s139
      %s142 = sphi 0, %s141
      %s156 = sphi 0, %s142
      %s160 = sphi 0, %s160
      %s162 = sphi 0, %s160
      %s163 = sphi 0, %s162
      %s177 = sphi 0, %s163
      %s183 = sphi 0, %s185
      %s186 = sphi 0, %s183
      %s187 = sphi 0, %s186
      %s203 = sphi 0, %s187
    $region4: #{tpu_custom_call.1} parent=1 // loop_header_branch
      %24 = sbr.rel (%p22) target = $region8
    $region5: #{tpu_custom_call.1} parent=1 // loop_body
      %s26 = ssub.s32 %s21, 1
      %s27 = ssub.s32 %s21, 2
      %s28 = sadd.s32 %s21, 1
      %s29 = ssub.s32 %s21, %s28
      %p30 = scmp.eq.s32.totalorder %s29, 0
      %s32 = sadd.s32 %s31, 1
      %s33 = scalar_select %p30, %s31, %s32
      %p36 = pneg %p30
      %p37 = scmp.eq.s32.totalorder %s21, 1
      %p38 = por %p36, %p37
      %p39 = scmp.ne.s32.totalorder %s31, %s34
      %p40 = scmp.eq.s32.totalorder %s21, 0
      %p41 = por %p39, %p40
      %p42 = scmp.ne.s32.totalorder %s31, %s34
      %p43 = scmp.eq.s32.totalorder %s26, 1
      %p44 = por %p42, %p43
      %p45 = scmp.ne.s32.totalorder %s34, %s35
      %p46 = scmp.eq.s32.totalorder %s26, 0
      %p47 = por %p45, %p46
      %p48 = scmp.ne.s32.totalorder %s34, %s35
      %p49 = scmp.eq.s32.totalorder %s27, 1
      %p50 = por %p48, %p49
      %p52 = scmp.ne.s32.totalorder %s35, %s51
      %p53 = scmp.eq.s32.totalorder %s27, 0
      %p54 = por %p52, %p53
      %s56 = sadd.s32 %s55, 1
      %p59 = scmp.eq.s32.totalorder %s21, 1
      %p60 = scmp.ne.s32.totalorder %s55, %s57
      %p61 = scmp.eq.s32.totalorder %s21, 0
      %p62 = por %p60, %p61
      %p63 = scmp.ne.s32.totalorder %s55, %s57
      %p64 = scmp.eq.s32.totalorder %s26, 1
      %p65 = por %p63, %p64
      %p66 = scmp.ne.s32.totalorder %s57, %s58
      %p67 = scmp.eq.s32.totalorder %s26, 0
      %p68 = por %p66, %p67
      %p69 = scmp.ne.s32.totalorder %s57, %s58
      %p70 = scmp.eq.s32.totalorder %s27, 1
      %p71 = por %p69, %p70
      %p73 = scmp.ne.s32.totalorder %s58, %s72
      %p74 = scmp.eq.s32.totalorder %s27, 0
      %p75 = por %p73, %p74
      %s77 = sadd.s32 %s76, 1
      %p80 = scmp.eq.s32.totalorder %s21, 1
      %p81 = scmp.ne.s32.totalorder %s76, %s78
      %p82 = scmp.eq.s32.totalorder %s21, 0
      %p83 = por %p81, %p82
      %p84 = scmp.ne.s32.totalorder %s76, %s78
      %p85 = scmp.eq.s32.totalorder %s26, 1
      %p86 = por %p84, %p85
      %p87 = scmp.ne.s32.totalorder %s78, %s79
      %p88 = scmp.eq.s32.totalorder %s26, 0
      %p89 = por %p87, %p88
      %p90 = scmp.ne.s32.totalorder %s78, %s79
      %p91 = scmp.eq.s32.totalorder %s27, 1
      %p92 = por %p90, %p91
      %p94 = scmp.ne.s32.totalorder %s79, %s93
      %p95 = scmp.eq.s32.totalorder %s27, 0
      %p96 = por %p94, %p95
      %s98 = sadd.s32 %s97, 1
      %p101 = scmp.eq.s32.totalorder %s21, 1
      %p102 = scmp.ne.s32.totalorder %s97, %s99
      %p103 = scmp.eq.s32.totalorder %s21, 0
      %p104 = por %p102, %p103
      %p105 = scmp.ne.s32.totalorder %s97, %s99
      %p106 = scmp.eq.s32.totalorder %s26, 1
      %p107 = por %p105, %p106
      %p108 = scmp.ne.s32.totalorder %s99, %s100
      %p109 = scmp.eq.s32.totalorder %s26, 0
      %p110 = por %p108, %p109
      %p111 = scmp.ne.s32.totalorder %s99, %s100
      %p112 = scmp.eq.s32.totalorder %s27, 1
      %p113 = por %p111, %p112
      %p115 = scmp.ne.s32.totalorder %s100, %s114
      %p116 = scmp.eq.s32.totalorder %s27, 0
      %p117 = por %p115, %p116
      %s119 = sadd.s32 %s118, 1
      %p122 = scmp.eq.s32.totalorder %s21, 1
      %p123 = scmp.ne.s32.totalorder %s118, %s120
      %p124 = scmp.eq.s32.totalorder %s21, 0
      %p125 = por %p123, %p124
      %p126 = scmp.ne.s32.totalorder %s118, %s120
      %p127 = scmp.eq.s32.totalorder %s26, 1
      %p128 = por %p126, %p127
      %p129 = scmp.ne.s32.totalorder %s120, %s121
      %p130 = scmp.eq.s32.totalorder %s26, 0
      %p131 = por %p129, %p130
      %p132 = scmp.ne.s32.totalorder %s120, %s121
      %p133 = scmp.eq.s32.totalorder %s27, 1
      %p134 = por %p132, %p133
      %p136 = scmp.ne.s32.totalorder %s121, %s135
      %p137 = scmp.eq.s32.totalorder %s27, 0
      %p138 = por %p136, %p137
      %s140 = sadd.s32 %s139, 1
      %p143 = scmp.eq.s32.totalorder %s21, 1
      %p144 = scmp.ne.s32.totalorder %s139, %s141
      %p145 = scmp.eq.s32.totalorder %s21, 0
      %p146 = por %p144, %p145
      %p147 = scmp.ne.s32.totalorder %s139, %s141
      %p148 = scmp.eq.s32.totalorder %s26, 1
      %p149 = por %p147, %p148
      %p150 = scmp.ne.s32.totalorder %s141, %s142
      %p151 = scmp.eq.s32.totalorder %s26, 0
      %p152 = por %p150, %p151
      %p153 = scmp.ne.s32.totalorder %s141, %s142
      %p154 = scmp.eq.s32.totalorder %s27, 1
      %p155 = por %p153, %p154
      %p157 = scmp.ne.s32.totalorder %s142, %s156
      %p158 = scmp.eq.s32.totalorder %s27, 0
      %p159 = por %p157, %p158
      %s161 = sadd.s32 %s160, 1
      %p164 = scmp.eq.s32.totalorder %s21, 1
      %p165 = scmp.ne.s32.totalorder %s160, %s162
      %p166 = scmp.eq.s32.totalorder %s21, 0
      %p167 = por %p165, %p166
      %p168 = scmp.ne.s32.totalorder %s160, %s162
      %p169 = scmp.eq.s32.totalorder %s26, 1
      %p170 = por %p168, %p169
      %p171 = scmp.ne.s32.totalorder %s162, %s163
      %p172 = scmp.eq.s32.totalorder %s26, 0
      %p173 = por %p171, %p172
      %p174 = scmp.ne.s32.totalorder %s162, %s163
      %p175 = scmp.eq.s32.totalorder %s27, 1
      %p176 = por %p174, %p175
      %p178 = scmp.ne.s32.totalorder %s163, %s177
      %p179 = scmp.eq.s32.totalorder %s27, 0
      %p180 = por %p178, %p179
      %s181 = ssub.s32 %s21, %s28
      %p182 = scmp.eq.s32.totalorder %s181, 0
      %s184 = sadd.s32 %s183, 1
      %s185 = scalar_select %p182, %s183, %s184
      %p188 = pneg %p182
      %p189 = scmp.eq.s32.totalorder %s21, 1
      %p190 = por %p188, %p189
      %p191 = scmp.ne.s32.totalorder %s183, %s186
      %p192 = scmp.eq.s32.totalorder %s21, 0
      %p193 = por %p191, %p192
      %p194 = scmp.ne.s32.totalorder %s183, %s186
      %p195 = scmp.eq.s32.totalorder %s26, 1
      %p196 = por %p194, %p195
      %p197 = scmp.ne.s32.totalorder %s186, %s187
      %p198 = scmp.eq.s32.totalorder %s26, 0
      %p199 = por %p197, %p198
      %p200 = scmp.ne.s32.totalorder %s186, %s187
      %p201 = scmp.eq.s32.totalorder %s27, 1
      %p202 = por %p200, %p201
      %p204 = scmp.ne.s32.totalorder %s187, %s203
      %p205 = scmp.eq.s32.totalorder %s27, 0
      %p206 = por %p204, %p205
      %p207 = scmp.le.s32.totalorder 1, %s21
      %p208 = scmp.lt.s32.totalorder %s21, 3
      %p209 = pnand %p207, %p208
      %p210 = pneg %p209
      // Predicated region
      $region9: #{tpu_custom_call.1} parent=5 // pred_check
        _
      $region10: #{tpu_custom_call.1} parent=5 // pred_check_branch
        %212 = sbr.rel (%p209) target = $region12
      $region11: #{tpu_custom_call.1} parent=5 // pred_region
        %s213 = ssub.s32 %s21, 1
        // Predicated region
        $region13: #{tpu_custom_call.1} parent=11 // pred_check
          %p214 = pneg %p68
        $region14: #{tpu_custom_call.1} parent=11 // pred_check_branch
          %216 = sbr.rel (%p214) target = $region16
        $region15: #{tpu_custom_call.1} parent=11 // pred_region
          %218 = vsyncadd [#allocation6], 0
          %s219 = sshll.u32 %s1, 4
          %s220 = int_to_ptr.hbm [resolvable:$true] %s219
          %s221 = sshll.u32 [#allocation5], 4
          %s222 = int_to_ptr.vmem [resolvable:$true] %s221
          %227 = dma.hbm_to_vmem [thread:$0]  %s220, 2048, %s222, [#allocation6], 128, 128, 8
        $region16: #{tpu_custom_call.1} parent=11 // pred_fallthru
          _
        // Predicated region
        $region17: #{tpu_custom_call.1} parent=11 // pred_check
          %p228 = pneg %p89
        $region18: #{tpu_custom_call.1} parent=11 // pred_check_branch
          %230 = sbr.rel (%p228) target = $region20
        $region19: #{tpu_custom_call.1} parent=11 // pred_region
          %232 = vsyncadd [#allocation6], 0
          %s233 = sshll.u32 %s2, 4
          %s234 = int_to_ptr.hbm [resolvable:$true] %s233
          %s235 = sshll.u32 [#allocation7], 4
          %s236 = int_to_ptr.vmem [resolvable:$true] %s235
          %241 = dma.hbm_to_vmem [thread:$0]  %s234, 2048, %s236, [#allocation6], 128, 128, 8
        $region20: #{tpu_custom_call.1} parent=11 // pred_fallthru
          _
        // Predicated region
        $region21: #{tpu_custom_call.1} parent=11 // pred_check
          %p242 = pneg %p110
        $region22: #{tpu_custom_call.1} parent=11 // pred_check_branch
          %244 = sbr.rel (%p242) target = $region24
        $region23: #{tpu_custom_call.1} parent=11 // pred_region
          _
        $region24: #{tpu_custom_call.1} parent=11 // pred_fallthru
          _
        // Predicated region
        $region25: #{tpu_custom_call.1} parent=11 // pred_check
          %p245 = pneg %p131
        $region26: #{tpu_custom_call.1} parent=11 // pred_check_branch
          %247 = sbr.rel (%p245) target = $region28
        $region27: #{tpu_custom_call.1} parent=11 // pred_region
          _
        $region28: #{tpu_custom_call.1} parent=11 // pred_fallthru
          _
        // Predicated region
        $region29: #{tpu_custom_call.1} parent=11 // pred_check
          %p248 = pneg %p152
        $region30: #{tpu_custom_call.1} parent=11 // pred_check_branch
          %250 = sbr.rel (%p248) target = $region32
        $region31: #{tpu_custom_call.1} parent=11 // pred_region
          %252 = vsyncadd [#allocation9], 0
          %s253 = sshll.u32 %s5, 4
          %s254 = int_to_ptr.hbm [resolvable:$true] %s253
          %s255 = sshll.u32 [#allocation8], 4
          %s256 = int_to_ptr.vmem [resolvable:$true] %s255
          %261 = dma.hbm_to_vmem [thread:$0]  %s254, 2048, %s256, [#allocation9], 128, 128, 8
        $region32: #{tpu_custom_call.1} parent=11 // pred_fallthru
          _
        // Predicated region
        $region33: #{tpu_custom_call.1} parent=11 // pred_check
          %p262 = pneg %p173
        $region34: #{tpu_custom_call.1} parent=11 // pred_check_branch
          %264 = sbr.rel (%p262) target = $region36
        $region35: #{tpu_custom_call.1} parent=11 // pred_region
          _
        $region36: #{tpu_custom_call.1} parent=11 // pred_fallthru
          _
      $region12: #{tpu_custom_call.1} parent=5 // pred_fallthru
        _
      %p265 = scmp.lt.s32.totalorder %s21, 2
      // Predicated region
      $region37: #{tpu_custom_call.1} parent=5 // pred_check
        %p266 = pneg %p265
      $region38: #{tpu_custom_call.1} parent=5 // pred_check_branch
        %268 = sbr.rel (%p266) target = $region40
      $region39: #{tpu_custom_call.1} parent=5 // pred_region
        // Predicated region
        $region41: #{tpu_custom_call.1} parent=39 // pred_check
          %p269 = pneg %p41
        $region42: #{tpu_custom_call.1} parent=39 // pred_check_branch
          %271 = sbr.rel (%p269) target = $region44
        $region43: #{tpu_custom_call.1} parent=39 // pred_region
          %s272 = sand.u32 %s31, 1
          %s273 = scalar_lea.sflag [#allocation3], %s272
          %s274 = sand.u32 %s31, 1
          %s275 = smul.addr %s274, 8
          %s276 = scalar_lea.vmem [#allocation2], %s275
          %278 = vsyncadd %s273, 0
          %s279 = smul.addr %s21, 8
          %s280 = scalar_lea.hbm %s0, %s279
          %s282 = sshll.u32 %s280, 4
          %s283 = int_to_ptr.hbm [resolvable:$true] %s282
          %s284 = sshll.u32 %s276, 4
          %s285 = int_to_ptr.vmem [resolvable:$true] %s284
          %287 = dma.hbm_to_vmem [thread:$0]  %s283, 128, %s285, %s273
        $region44: #{tpu_custom_call.1} parent=39 // pred_fallthru
          _
      $region40: #{tpu_custom_call.1} parent=5 // pred_fallthru
        _
      %p288 = scmp.le.s32.totalorder 1, %s21
      %p289 = scmp.lt.s32.totalorder %s21, 3
      %p290 = pnand %p288, %p289
      %p291 = pneg %p290
      // Predicated region
      $region45: #{tpu_custom_call.1} parent=5 // pred_check
        _
      $region46: #{tpu_custom_call.1} parent=5 // pred_check_branch
        %293 = sbr.rel (%p290) target = $region48
      $region47: #{tpu_custom_call.1} parent=5 // pred_region
        %s294 = ssub.s32 %s21, 1
        %s295 = sand.u32 %s34, 1
        %s296 = scalar_lea.sflag [#allocation3], %s295
        %s297 = sand.u32 %s34, 1
        %s298 = smul.addr %s297, 8
        %s299 = scalar_lea.vmem [#allocation2], %s298
        // Predicated region
        $region49: #{tpu_custom_call.1} parent=47 // pred_check
          %p300 = pneg %p47
        $region50: #{tpu_custom_call.1} parent=47 // pred_check_branch
          %302 = sbr.rel (%p300) target = $region52
        $region51: #{tpu_custom_call.1} parent=47 // pred_region
          %304 = dma.done %s296, 128
        $region52: #{tpu_custom_call.1} parent=47 // pred_fallthru
          _
        // Predicated region
        $region53: #{tpu_custom_call.1} parent=47 // pred_check
          %p305 = pneg %p68
        $region54: #{tpu_custom_call.1} parent=47 // pred_check_branch
          %307 = sbr.rel (%p305) target = $region56
        $region55: #{tpu_custom_call.1} parent=47 // pred_region
          %309 = dma.done [#allocation6], 2048
        $region56: #{tpu_custom_call.1} parent=47 // pred_fallthru
          _
        // Predicated region
        $region57: #{tpu_custom_call.1} parent=47 // pred_check
          %p310 = pneg %p89
        $region58: #{tpu_custom_call.1} parent=47 // pred_check_branch
          %312 = sbr.rel (%p310) target = $region60
        $region59: #{tpu_custom_call.1} parent=47 // pred_region
          %314 = dma.done [#allocation6], 2048
        $region60: #{tpu_custom_call.1} parent=47 // pred_fallthru
          _
        // Predicated region
        $region61: #{tpu_custom_call.1} parent=47 // pred_check
          %p315 = pneg %p152
        $region62: #{tpu_custom_call.1} parent=47 // pred_check_branch
          %317 = sbr.rel (%p315) target = $region64
        $region63: #{tpu_custom_call.1} parent=47 // pred_region
          %319 = dma.done [#allocation9], 2048
        $region64: #{tpu_custom_call.1} parent=47 // pred_fallthru
          _
        %s320 = sand.u32 %s34, 1
        %s321 = scalar_lea.sflag [#allocation3], %s320
        %s322 = sand.u32 %s34, 1
        %s323 = smul.addr %s322, 8
        %s324 = scalar_lea.vmem [#allocation2], %s323
        %p325 = pneg %p47
        %p326 = pneg %p44
        %p327 = pneg %p68
        %p328 = pneg %p65
        %p329 = pneg %p89
        %p330 = pneg %p86
        %p331 = pneg %p110
        %p332 = pneg %p107
        %p333 = pneg %p131
        %p334 = pneg %p128
        %p335 = pneg %p152
        %p336 = pneg %p149
        %p337 = pneg %p173
        %p338 = pneg %p170
        %p339 = pneg %p199
        %p340 = pneg %p196
        %s341 = sand.u32 %s186, 1
        %s342 = scalar_lea.sflag [#allocation4], %s341
        %s343 = sand.u32 %s186, 1
        %s344 = smul.addr %s343, 8
        %s345 = scalar_lea.vmem [#allocation10], %s344
        %v346 = vld [vmem:[%s299] sm:$0xff]
        %v347 = vld [vmem:[#allocation5] sm:$0xff]
        %v348 = vld [vmem:[#allocation5 + $0x8] sm:$0xff]
        %v349 = vld [vmem:[#allocation5 + $0x10] sm:$0xff]
        %v350 = vld [vmem:[#allocation5 + $0x18] sm:$0xff]
        %v351 = vld [vmem:[#allocation5 + $0x20] sm:$0xff]
        %v352 = vld [vmem:[#allocation5 + $0x28] sm:$0xff]
        %v353 = vld [vmem:[#allocation5 + $0x30] sm:$0xff]
        %v354 = vld [vmem:[#allocation5 + $0x38] sm:$0xff]
        %v355 = vld [vmem:[#allocation5 + $0x40] sm:$0xff]
        %v356 = vld [vmem:[#allocation5 + $0x48] sm:$0xff]
        %v357 = vld [vmem:[#allocation5 + $0x50] sm:$0xff]
        %v358 = vld [vmem:[#allocation5 + $0x58] sm:$0xff]
        %v359 = vld [vmem:[#allocation5 + $0x60] sm:$0xff]
        %v360 = vld [vmem:[#allocation5 + $0x68] sm:$0xff]
        %v361 = vld [vmem:[#allocation5 + $0x70] sm:$0xff]
        %v362 = vld [vmem:[#allocation5 + $0x78] sm:$0xff]
        %v363 = vld [vmem:[%s3] sm:$0x1]
        %v365 = vperm.slane %v363, 0
        %367 = vmatpush.msra.mxu0 %v362
        %368 = vmatpush.msra.mxu0 %v361
        %369 = vmatpush.msra.mxu0 %v360
        %370 = vmatpush.msra.mxu0 %v359
        %371 = vmatpush.msra.mxu0 %v358
        %372 = vmatpush.msra.mxu0 %v357
        %373 = vmatpush.msra.mxu0 %v356
        %374 = vmatpush.msra.mxu0 %v355
        %375 = vmatpush.msra.mxu0 %v354
        %376 = vmatpush.msra.mxu0 %v353
        %377 = vmatpush.msra.mxu0 %v352
        %378 = vmatpush.msra.mxu0 %v351
        %379 = vmatpush.msra.mxu0 %v350
        %380 = vmatpush.msra.mxu0 %v349
        %381 = vmatpush.msra.mxu0 %v348
        %382 = vmatpush.msra.mxu0 %v347
        %383 = vmatmul.f32.gmra.mxu0 %v346
        %v384 = vpop.f32.mrf.mxu0
        %v385 = vadd.f32 %v365, %v384
        %386 = vdwg.mxu0
        %v387 = vld [vmem:[#allocation7] sm:$0xff]
        %v388 = vld [vmem:[#allocation7 + $0x8] sm:$0xff]
        %v389 = vld [vmem:[#allocation7 + $0x10] sm:$0xff]
        %v390 = vld [vmem:[#allocation7 + $0x18] sm:$0xff]
        %v391 = vld [vmem:[#allocation7 + $0x20] sm:$0xff]
        %v392 = vld [vmem:[#allocation7 + $0x28] sm:$0xff]
        %v393 = vld [vmem:[#allocation7 + $0x30] sm:$0xff]
        %v394 = vld [vmem:[#allocation7 + $0x38] sm:$0xff]
        %v395 = vld [vmem:[#allocation7 + $0x40] sm:$0xff]
        %v396 = vld [vmem:[#allocation7 + $0x48] sm:$0xff]
        %v397 = vld [vmem:[#allocation7 + $0x50] sm:$0xff]
        %v398 = vld [vmem:[#allocation7 + $0x58] sm:$0xff]
        %v399 = vld [vmem:[#allocation7 + $0x60] sm:$0xff]
        %v400 = vld [vmem:[#allocation7 + $0x68] sm:$0xff]
        %v401 = vld [vmem:[#allocation7 + $0x70] sm:$0xff]
        %v402 = vld [vmem:[#allocation7 + $0x78] sm:$0xff]
        %v403 = vld [vmem:[%s4] sm:$0x1]
        %v405 = vperm.slane %v403, 0
        %407 = vmatpush.msra.mxu0 %v402
        %408 = vmatpush.msra.mxu0 %v401
        %409 = vmatpush.msra.mxu0 %v400
        %410 = vmatpush.msra.mxu0 %v399
        %411 = vmatpush.msra.mxu0 %v398
        %412 = vmatpush.msra.mxu0 %v397
        %413 = vmatpush.msra.mxu0 %v396
        %414 = vmatpush.msra.mxu0 %v395
        %415 = vmatpush.msra.mxu0 %v394
        %416 = vmatpush.msra.mxu0 %v393
        %417 = vmatpush.msra.mxu0 %v392
        %418 = vmatpush.msra.mxu0 %v391
        %419 = vmatpush.msra.mxu0 %v390
        %420 = vmatpush.msra.mxu0 %v389
        %421 = vmatpush.msra.mxu0 %v388
        %422 = vmatpush.msra.mxu0 %v387
        %423 = vmatmul.f32.gmra.mxu0 %v346
        %v424 = vpop.f32.mrf.mxu0
        %v425 = vadd.f32 %v405, %v424
        %426 = vdwg.mxu0
        %v427 = vxor.u32 %v385, 2147483648
        %v428 = vmul.f32 %v427, 1.442695
        %v429 = vpow.pop %v428
        %v430 = vadd.f32 %v429, 1.0
        %v431 = vrcp.pop %v430
        %v432 = vmul.f32 %v430, %v431
        %v433 = vsub.f32 1.0, %v432
        %v434 = vmul.f32 %v431, %v433
        %v435 = vadd.f32 %v431, %v434
        %vm436 = vweird.f32 %v430
        %vm437 = vweird.f32 %v431
        %vm438 = vmor %vm436, %vm437
        %v439 = vsel %vm438, %v431, %v435
        %v440 = vand.u32 2147483647, %v430
        %vm441 = vcmp.eq.f32.partialorder %v440, 8.507059e+37
        %v442 = vand.u32 %v430, 2147483648
        %v443 = vor.u32 1.1754944e-38, %v442
        %v444 = vsel %vm441, %v443, %v439
        %v445 = vmul.f32 1.0, %v444
        %v446 = vmul.f32 %v385, %v445
        %v447 = vmul.f32 %v446, %v425
        %v448 = vld [vmem:[#allocation8] sm:$0xff]
        %v449 = vld [vmem:[#allocation8 + $0x8] sm:$0xff]
        %v450 = vld [vmem:[#allocation8 + $0x10] sm:$0xff]
        %v451 = vld [vmem:[#allocation8 + $0x18] sm:$0xff]
        %v452 = vld [vmem:[#allocation8 + $0x20] sm:$0xff]
        %v453 = vld [vmem:[#allocation8 + $0x28] sm:$0xff]
        %v454 = vld [vmem:[#allocation8 + $0x30] sm:$0xff]
        %v455 = vld [vmem:[#allocation8 + $0x38] sm:$0xff]
        %v456 = vld [vmem:[#allocation8 + $0x40] sm:$0xff]
        %v457 = vld [vmem:[#allocation8 + $0x48] sm:$0xff]
        %v458 = vld [vmem:[#allocation8 + $0x50] sm:$0xff]
        %v459 = vld [vmem:[#allocation8 + $0x58] sm:$0xff]
        %v460 = vld [vmem:[#allocation8 + $0x60] sm:$0xff]
        %v461 = vld [vmem:[#allocation8 + $0x68] sm:$0xff]
        %v462 = vld [vmem:[#allocation8 + $0x70] sm:$0xff]
        %v463 = vld [vmem:[#allocation8 + $0x78] sm:$0xff]
        %v464 = vld [vmem:[%s6] sm:$0x1]
        %v466 = vperm.slane %v464, 0
        %468 = vmatpush.msra.mxu0 %v463
        %469 = vmatpush.msra.mxu0 %v462
        %470 = vmatpush.msra.mxu0 %v461
        %471 = vmatpush.msra.mxu0 %v460
        %472 = vmatpush.msra.mxu0 %v459
        %473 = vmatpush.msra.mxu0 %v458
        %474 = vmatpush.msra.mxu0 %v457
        %475 = vmatpush.msra.mxu0 %v456
        %476 = vmatpush.msra.mxu0 %v455
        %477 = vmatpush.msra.mxu0 %v454
        %478 = vmatpush.msra.mxu0 %v453
        %479 = vmatpush.msra.mxu0 %v452
        %480 = vmatpush.msra.mxu0 %v451
        %481 = vmatpush.msra.mxu0 %v450
        %482 = vmatpush.msra.mxu0 %v449
        %483 = vmatpush.msra.mxu0 %v448
        %484 = vmatmul.f32.gmra.mxu0 %v447
        %v485 = vpop.f32.mrf.mxu0
        %v486 = vadd.f32 %v466, %v485
        %487 = vdwg.mxu0
        %488 = vst [vmem:[%s345] sm:$0xff] %v486
        %s489 = sand.u32 %s186, 1
        %s490 = scalar_lea.sflag [#allocation4], %s489
        %s491 = sand.u32 %s186, 1
        %s492 = smul.addr %s491, 8
        %s493 = scalar_lea.vmem [#allocation10], %s492
        // Predicated region
        $region65: #{tpu_custom_call.1} parent=47 // pred_check
          %p494 = pneg %p196
        $region66: #{tpu_custom_call.1} parent=47 // pred_check_branch
          %496 = sbr.rel (%p494) target = $region68
        $region67: #{tpu_custom_call.1} parent=47 // pred_region
          %498 = vsyncadd %s490, 0
          %s499 = smul.addr %s26, 8
          %s500 = scalar_lea.hbm %s7, %s499
          %s502 = sshll.u32 %s493, 4
          %s503 = int_to_ptr.vmem [resolvable:$true] %s502
          %s504 = sshll.u32 %s500, 4
          %s505 = int_to_ptr.hbm [resolvable:$true] %s504
          %507 = dma.vmem_to_hbm [thread:$0]  %s503, 128, %s505, %s490
        $region68: #{tpu_custom_call.1} parent=47 // pred_fallthru
          _
      $region48: #{tpu_custom_call.1} parent=5 // pred_fallthru
        _
      %p508 = scmp.le.s32.totalorder 2, %s21
      // Predicated region
      $region69: #{tpu_custom_call.1} parent=5 // pred_check
        %p509 = pneg %p508
      $region70: #{tpu_custom_call.1} parent=5 // pred_check_branch
        %511 = sbr.rel (%p509) target = $region72
      $region71: #{tpu_custom_call.1} parent=5 // pred_region
        %s512 = ssub.s32 %s21, 2
        // Predicated region
        $region73: #{tpu_custom_call.1} parent=71 // pred_check
          %p513 = pneg %p202
        $region74: #{tpu_custom_call.1} parent=71 // pred_check_branch
          %515 = sbr.rel (%p513) target = $region76
        $region75: #{tpu_custom_call.1} parent=71 // pred_region
          %s516 = sand.u32 %s187, 1
          %s517 = scalar_lea.sflag [#allocation4], %s516
          %s518 = sand.u32 %s187, 1
          %s519 = smul.addr %s518, 8
          %s520 = scalar_lea.vmem [#allocation10], %s519
          %522 = dma.done %s517, 128
        $region76: #{tpu_custom_call.1} parent=71 // pred_fallthru
          _
      $region72: #{tpu_custom_call.1} parent=5 // pred_fallthru
        _
    $region6: #{tpu_custom_call.1} parent=1 // loop_footer
      %s25 = sadd.s32 1, %s21
    $region7: #{tpu_custom_call.1} parent=1 // loop_footer_branch
      %20 = sbr.rel target = $region3
    $region8: #{tpu_custom_call.1} parent=1 // loop_exit
      _
    %523 = vsyncpa [#allocation3], 1
    %s524 = scalar_lea.sflag [#allocation3], 1
    %525 = vsyncpa %s524, 1
    %526 = vsyncpa [#allocation6], 1
    %527 = vsyncpa [#allocation9], 1
    %528 = vsyncpa [#allocation4], 1
    %s529 = scalar_lea.sflag [#allocation4], 1
    %530 = vsyncpa %s529, 1

</llo_original>
